<compile_context>
chip_gen: v7x
topology: tpu7x:2x2x1
jax: 0.10.0
libtpu: 0.0.40
codegen_flags: <defaults>
</compile_context>

<pallas_src>
import jax
import jax.numpy as jnp
from jax import lax
from jax.experimental import pallas as pl
from jax.experimental.pallas import tpu as pltpu


def ffnn_kernel(x_ref, w1_ref, b1_ref, w2_ref, b2_ref, out_ref):
    x = x_ref[...]                     # [TB, D]  (f32 or bf16)
    w1 = w1_ref[...]                   # [H, D]   (PyTorch layout, resident)
    w2 = w2_ref[...]                   # [O, H]   (PyTorch layout, resident)

    # hidden = ReLU(x @ W1^T + b1): contract dim 1 of x with dim 1 of W1.
    # The MXU handles the transposed contraction directly -- no transpose op emitted.
    h = lax.dot_general(
        x, w1,
        dimension_numbers=(((1,), (1,)), ((), ())),
        preferred_element_type=jnp.float32,
    )                                  # [TB, H] f32
    h = jnp.maximum(h + b1_ref[...].astype(jnp.float32), 0.0)

    # logits = hidden @ W2^T + b2. Matmul operands in the weights' dtype (bf16-friendly);
    # bias add and log_softmax stay in f32.
    logits = lax.dot_general(
        h.astype(w2.dtype), w2,
        dimension_numbers=(((1,), (1,)), ((), ())),
        preferred_element_type=jnp.float32,
    )                                  # [TB, O] f32
    logits = logits + b2_ref[...].astype(jnp.float32)

    # Numerically stable log_softmax along the class dim.
    m = jnp.max(logits, axis=-1, keepdims=True)
    shifted = logits - m
    lse = jnp.log(jnp.sum(jnp.exp(shifted), axis=-1, keepdims=True))
    out_ref[...] = (shifted - lse).astype(out_ref.dtype)


def ffnn_forward(x, w1, b1, w2, b2, *, block_b=512):
    """x: [B, D]; w1: [H, D]; b1: [H]; w2: [O, H]; b2: [O]  (PyTorch layouts, any float dtype)."""
    B, D = x.shape
    H, D2 = w1.shape
    O, H2 = w2.shape
    assert D == D2 and H == H2 and b1.shape == (H,) and b2.shape == (O,)

    # Free metadata reshapes (no data movement -- unlike the transposes we removed).
    b1_2d = b1.reshape(1, H)
    b2_2d = b2.reshape(1, O)

    tb = min(block_b, B)               # row tile; clamps to full batch when B is small
    grid = (pl.cdiv(B, tb),)

    return pl.pallas_call(
        ffnn_kernel,
        out_shape=jax.ShapeDtypeStruct((B, O), jnp.float32),
        grid_spec=pltpu.PrefetchScalarGridSpec(
            num_scalar_prefetch=0,
            grid=grid,
            in_specs=[
                pl.BlockSpec((tb, D), lambda i: (i, 0)),   # x: streamed over batch tiles
                pl.BlockSpec((H, D), lambda i: (0, 0)),    # W1: resident across all tiles
                pl.BlockSpec((1, H), lambda i: (0, 0)),    # b1: resident
                pl.BlockSpec((O, H), lambda i: (0, 0)),    # W2: resident
                pl.BlockSpec((1, O), lambda i: (0, 0)),    # b2: resident
            ],
            out_specs=pl.BlockSpec((tb, O), lambda i: (i, 0)),
        ),
        compiler_params=pltpu.CompilerParams(
            # Batch tiles are independent -> shard across v7x's 2 TensorCores.
            dimension_semantics=("parallel",),
        ),
    )(x, w1, b1_2d, w2, b2_2d)


def reference_forward(x, w1, b1, w2, b2):
    hidden = jnp.maximum(x @ w1.T + b1, 0.0)
    logits = hidden @ w2.T + b2
    return jax.nn.log_softmax(logits, axis=-1)


if __name__ == "__main__":
    D, H, O = 128, 32, 5
    key = jax.random.PRNGKey(0)
    kx, k1, k2, k3, k4 = jax.random.split(key, 5)

    # Deterministic synthetic parameters (uniform, roughly like PyTorch Linear init).
    w1 = jax.random.uniform(k1, (H, D), jnp.float32, -1.0 / D ** 0.5, 1.0 / D ** 0.5)
    b1 = jax.random.uniform(k2, (H,), jnp.float32, -1.0 / D ** 0.5, 1.0 / D ** 0.5)
    w2 = jax.random.uniform(k3, (O, H), jnp.float32, -1.0 / H ** 0.5, 1.0 / H ** 0.5)
    b2 = jax.random.uniform(k4, (O,), jnp.float32, -1.0 / H ** 0.5, 1.0 / H ** 0.5)

    # -- Test 1: small batch (typical module usage), f32, single full-array tile --
    B = 8
    x = jax.random.normal(kx, (B, D), dtype=jnp.float32)
    out = jax.block_until_ready(ffnn_forward(x, w1, b1, w2, b2))
    ref = reference_forward(x, w1, b1, w2, b2)
    assert out.shape == (B, O)
    assert jnp.allclose(out, ref, atol=2e-5, rtol=1e-5), "f32 small-batch mismatch"

    # -- Test 2: larger batch exercising the B-grid (2 tiles of 512 rows) --
    B = 1024
    x_big = jax.random.normal(kx, (B, D), dtype=jnp.float32)
    out_big = jax.block_until_ready(ffnn_forward(x_big, w1, b1, w2, b2))
    ref_big = reference_forward(x_big, w1, b1, w2, b2)
    assert jnp.allclose(out_big, ref_big, atol=2e-5, rtol=1e-5), "f32 tiled-batch mismatch"

    # -- Test 3: bf16 inputs/weights (v6e/v7x memory-bound path), f32 epilogue --
    xb = x_big.astype(jnp.bfloat16)
    w1b, b1b, w2b, b2b = (a.astype(jnp.bfloat16) for a in (w1, b1, w2, b2))
    out_bf = jax.block_until_ready(ffnn_forward(xb, w1b, b1b, w2b, b2b))
    ref_bf = reference_forward(
        xb.astype(jnp.float32), w1b.astype(jnp.float32), b1b.astype(jnp.float32),
        w2b.astype(jnp.float32), b2b.astype(jnp.float32))
    assert out_bf.dtype == jnp.float32
    assert jnp.allclose(out_bf, ref_bf, atol=3e-2, rtol=3e-2), "bf16 path mismatch"

    print("KERNEL_OK")
</pallas_src>

<mosaic_0001>
module attributes {stable_mosaic.version = 11 : i64} {
  func.func @ffnn_kernel(%arg0: i32, %arg1: memref<8x128xf32, #tpu.memory_space<vmem>>, %arg2: memref<32x128xf32, #tpu.memory_space<vmem>>, %arg3: memref<1x32xf32, #tpu.memory_space<vmem>>, %arg4: memref<5x32xf32, #tpu.memory_space<vmem>>, %arg5: memref<1x5xf32, #tpu.memory_space<vmem>>, %arg6: memref<8x5xf32, #tpu.memory_space<vmem>>) attributes {dimension_semantics = [#tpu.dimension_semantics<parallel>], iteration_bounds = array<i64: 1>, scalar_prefetch = 0 : i64, scratch_operands = 0 : i64, tpu.core_type = #tpu.core_type<tc>, window_params = [{transform_indices = @transform_0, window_bounds = array<i64: 8, 128>}, {pipeline_mode = #tpu.pipeline_mode<synchronous>, transform_indices = @transform_1, window_bounds = array<i64: 32, 128>}, {pipeline_mode = #tpu.pipeline_mode<synchronous>, transform_indices = @transform_2, window_bounds = array<i64: 1, 32>}, {pipeline_mode = #tpu.pipeline_mode<synchronous>, transform_indices = @transform_3, window_bounds = array<i64: 5, 32>}, {pipeline_mode = #tpu.pipeline_mode<synchronous>, transform_indices = @transform_4, window_bounds = array<i64: 1, 5>}, {transform_indices = @transform_5, window_bounds = array<i64: 8, 5>}]} {
    %c0 = arith.constant 0 : index
    %c0_0 = arith.constant 0 : index
    %0 = vector.load %arg1[%c0, %c0_0] : memref<8x128xf32, #tpu.memory_space<vmem>>, vector<8x128xf32>
    %c0_1 = arith.constant 0 : index
    %c0_2 = arith.constant 0 : index
    %1 = vector.load %arg2[%c0_1, %c0_2] : memref<32x128xf32, #tpu.memory_space<vmem>>, vector<32x128xf32>
    %c0_3 = arith.constant 0 : index
    %c0_4 = arith.constant 0 : index
    %2 = vector.load %arg4[%c0_3, %c0_4] : memref<5x32xf32, #tpu.memory_space<vmem>>, vector<5x32xf32>
    %cst = arith.constant dense<0.000000e+00> : vector<8x32xf32>
    %3 = tpu.matmul %0, %1, %cst {dimension_numbers = #tpu.dot_dimension_numbers<[1], [1], [0], [0], [0, 0, 1, 0], [], []>} : vector<8x128xf32>, vector<32x128xf32>, vector<8x32xf32> -> vector<8x32xf32>
    %c0_5 = arith.constant 0 : index
    %c0_6 = arith.constant 0 : index
    %4 = vector.load %arg3[%c0_5, %c0_6] : memref<1x32xf32, #tpu.memory_space<vmem>>, vector<1x32xf32>
    %5 = vector.broadcast %4 : vector<1x32xf32> to vector<8x32xf32>
    %6 = arith.addf %3, %5 : vector<8x32xf32>
    %cst_7 = arith.constant 0.000000e+00 : f32
    %7 = vector.broadcast %cst_7 : f32 to vector<8x32xf32>
    %8 = arith.maximumf %6, %7 : vector<8x32xf32>
    %cst_8 = arith.constant dense<0.000000e+00> : vector<8x5xf32>
    %9 = tpu.matmul %8, %2, %cst_8 {dimension_numbers = #tpu.dot_dimension_numbers<[1], [1], [0], [0], [0, 0, 1, 0], [], []>} : vector<8x32xf32>, vector<5x32xf32>, vector<8x5xf32> -> vector<8x5xf32>
    %c0_9 = arith.constant 0 : index
    %c0_10 = arith.constant 0 : index
    %10 = vector.load %arg5[%c0_9, %c0_10] : memref<1x5xf32, #tpu.memory_space<vmem>>, vector<1x5xf32>
    %11 = vector.broadcast %10 : vector<1x5xf32> to vector<8x5xf32>
    %12 = arith.addf %9, %11 : vector<8x5xf32>
    %cst_11 = arith.constant dense<0xFF800000> : vector<8xf32>
    %13 = vector.multi_reduction <maximumf>, %12, %cst_11 [1] : vector<8x5xf32> to vector<8xf32>
    %14 = vector.shape_cast %13 : vector<8xf32> to vector<8x1xf32>
    %15 = vector.broadcast %14 : vector<8x1xf32> to vector<8x5xf32>
    %16 = arith.subf %12, %15 : vector<8x5xf32>
    %17 = math.exp %16 : vector<8x5xf32>
    %cst_12 = arith.constant dense<0.000000e+00> : vector<8xf32>
    %18 = vector.multi_reduction <add>, %17, %cst_12 [1] : vector<8x5xf32> to vector<8xf32>
    %19 = vector.shape_cast %18 : vector<8xf32> to vector<8x1xf32>
    %20 = math.log %19 : vector<8x1xf32>
    %21 = vector.broadcast %20 : vector<8x1xf32> to vector<8x5xf32>
    %22 = arith.subf %16, %21 : vector<8x5xf32>
    %c0_13 = arith.constant 0 : index
    %c0_14 = arith.constant 0 : index
    %23 = vector.load %arg6[%c0_13, %c0_14] : memref<8x5xf32, #tpu.memory_space<vmem>>, vector<8x5xf32>
    tpu.vector_store %arg6[%c0_13, %c0_14], %22 {strides = array<i32>} : memref<8x5xf32, #tpu.memory_space<vmem>>, vector<8x5xf32>,
    return
  }
  func.func @transform_0(%arg0: i32) -> (i32, i32) {
    %c0_i32 = arith.constant 0 : i32
    %c0_i32_0 = arith.constant 0 : i32
    return %arg0, %c0_i32 : i32, i32
  }
  func.func @transform_1(%arg0: i32) -> (i32, i32) {
    %c0_i32 = arith.constant 0 : i32
    %c0_i32_0 = arith.constant 0 : i32
    %c0_i32_1 = arith.constant 0 : i32
    return %c0_i32, %c0_i32_0 : i32, i32
  }
  func.func @transform_2(%arg0: i32) -> (i32, i32) {
    %c0_i32 = arith.constant 0 : i32
    %c0_i32_0 = arith.constant 0 : i32
    %c0_i32_1 = arith.constant 0 : i32
    return %c0_i32, %c0_i32_0 : i32, i32
  }
  func.func @transform_3(%arg0: i32) -> (i32, i32) {
    %c0_i32 = arith.constant 0 : i32
    %c0_i32_0 = arith.constant 0 : i32
    %c0_i32_1 = arith.constant 0 : i32
    return %c0_i32, %c0_i32_0 : i32, i32
  }
  func.func @transform_4(%arg0: i32) -> (i32, i32) {
    %c0_i32 = arith.constant 0 : i32
    %c0_i32_0 = arith.constant 0 : i32
    %c0_i32_1 = arith.constant 0 : i32
    return %c0_i32, %c0_i32_0 : i32, i32
  }
  func.func @transform_5(%arg0: i32) -> (i32, i32) {
    %c0_i32 = arith.constant 0 : i32
    %c0_i32_0 = arith.constant 0 : i32
    return %arg0, %c0_i32 : i32, i32
  }
}

</mosaic_0001>

<llo_original>
// kernel: tpu_custom_call.1
$region0: #{tpu_custom_call.1}
  #allocation0 [shape = 'u32[]', space=smem, size = 0x4, offset = 0x4, fixed_abs, tag = 'smem constant byte address 0x4 - core index']
  #allocation1 [shape = 'u32[144,128]{1,0:T(1,128)}', space=vmem, size = 0x12000, scoped, tag = 'internal scratch']
  %s0 = inlined_call_operand.hbm [shape: f32[8,128], index: 0, kind: input, shape index: {}]
  %s1 = inlined_call_operand.hbm [shape: f32[32,128], index: 1, kind: input, shape index: {}]
  %s2 = inlined_call_operand.vmem [shape: f32[1,32], index: 2, kind: input, shape index: {}]
  %s3 = inlined_call_operand.vmem [shape: f32[5,32], index: 3, kind: input, shape index: {}]
  %s4 = inlined_call_operand.vmem [shape: f32[1,5], index: 4, kind: input, shape index: {}]
  %s5 = inlined_call_operand.hbm [shape: f32[8,5], index: 5, kind: output, shape index: {}]
  %s6 = sld [smem:[#allocation0]]
  $region38: #{tpu_custom_call.1} parent=0
    _
  %s8 = ssub.s32 1, %s6
  %s9 = scalar_select 0, %s8, %s6
  $region1: #{tpu_custom_call.1} parent=0
    #allocation2 [shape = 'u8[4096]{0}', space=vmem, size = 0x1000, scoped, tag = 'input window, operand 0, single buffered']
    #allocation3 [shape = 's32[1]{0}', space=sflag, size = 0x4, scoped, tag = 'scoped memory for tpu_custom_call.1']
    #allocation4 [shape = 's32[1]{0}', space=sflag, size = 0x4, scoped, tag = 'scoped memory for tpu_custom_call.1']
    #allocation5 [shape = 'u8[16384]{0}', space=vmem, size = 0x4000, scoped, tag = 'input window, operand 1, single buffered']
    #allocation6 [shape = 's32[1]{0}', space=sflag, size = 0x4, scoped, tag = 'scoped memory for tpu_custom_call.1']
    #allocation7 [shape = 'u8[4096]{0}', space=vmem, size = 0x1000, scoped, tag = 'output window, operand 0, single buffered']
    %10 = vsyncpa [#allocation3], 0
    %11 = vsyncpa [#allocation6], 0
    %12 = vsyncpa [#allocation4], 0
    // Predicated region
    $region2: #{tpu_custom_call.1} parent=1 // pred_check
      _
    $region3: #{tpu_custom_call.1} parent=1 // pred_check_branch
      %14 = sbr.rel (0) target = $region5
    $region4: #{tpu_custom_call.1} parent=1 // pred_region
      %s16 = ssub.s32 128, 128
      %17 = vsyncadd [#allocation3], %s16
      %s19 = sshll.u32 [#allocation2], 4
      %s20 = int_to_ptr.vmem [resolvable:$true] %s19
      %22 = dma.hbm_to_vmem [thread:$0]  %s0, 128, %s20, [#allocation3]
    $region5: #{tpu_custom_call.1} parent=1 // pred_fallthru
      _
    // Predicated region
    $region6: #{tpu_custom_call.1} parent=1 // pred_check
      _
    $region7: #{tpu_custom_call.1} parent=1 // pred_check_branch
      %24 = sbr.rel (0) target = $region9
    $region8: #{tpu_custom_call.1} parent=1 // pred_region
      %s26 = ssub.s32 512, 512
      %27 = vsyncadd [#allocation6], %s26
      %s28 = sshll.u32 [#allocation5], 4
      %s29 = int_to_ptr.vmem [resolvable:$true] %s28
      %34 = dma.hbm_to_vmem [thread:$0]  %s1, 512, %s29, [#allocation6], 128, 128, 8
    $region9: #{tpu_custom_call.1} parent=1 // pred_fallthru
      _
    // Predicated region
    $region10: #{tpu_custom_call.1} parent=1 // pred_check
      _
    $region11: #{tpu_custom_call.1} parent=1 // pred_check_branch
      %36 = sbr.rel (0) target = $region13
    $region12: #{tpu_custom_call.1} parent=1 // pred_region
      _
    $region13: #{tpu_custom_call.1} parent=1 // pred_fallthru
      _
    // Predicated region
    $region14: #{tpu_custom_call.1} parent=1 // pred_check
      _
    $region15: #{tpu_custom_call.1} parent=1 // pred_check_branch
      %38 = sbr.rel (0) target = $region17
    $region16: #{tpu_custom_call.1} parent=1 // pred_region
      _
    $region17: #{tpu_custom_call.1} parent=1 // pred_fallthru
      _
    // Predicated region
    $region18: #{tpu_custom_call.1} parent=1 // pred_check
      _
    $region19: #{tpu_custom_call.1} parent=1 // pred_check_branch
      %40 = sbr.rel (0) target = $region21
    $region20: #{tpu_custom_call.1} parent=1 // pred_region
      _
    $region21: #{tpu_custom_call.1} parent=1 // pred_fallthru
      _
    // Predicated region
    $region22: #{tpu_custom_call.1} parent=1 // pred_check
      _
    $region23: #{tpu_custom_call.1} parent=1 // pred_check_branch
      %42 = sbr.rel (0) target = $region25
    $region24: #{tpu_custom_call.1} parent=1 // pred_region
      %43 = dma.done [#allocation3], 128
    $region25: #{tpu_custom_call.1} parent=1 // pred_fallthru
      _
    // Predicated region
    $region26: #{tpu_custom_call.1} parent=1 // pred_check
      _
    $region27: #{tpu_custom_call.1} parent=1 // pred_check_branch
      %45 = sbr.rel (0) target = $region29
    $region28: #{tpu_custom_call.1} parent=1 // pred_region
      %46 = dma.done [#allocation6], 512
    $region29: #{tpu_custom_call.1} parent=1 // pred_fallthru
      _
    %v47 = vld [vmem:[#allocation2] sm:$0xff]
    %v48 = vld [vmem:[#allocation5] sm:$0xff]
    %v49 = vld [vmem:[#allocation5 + $0x8] sm:$0xff]
    %v50 = vld [vmem:[#allocation5 + $0x10] sm:$0xff]
    %v51 = vld [vmem:[#allocation5 + $0x18] sm:$0xff]
    %v52 = vld [vmem:[%s3] sm:$0x1f]
    %v53 = vld [vmem:[%s2] sm:$0x1]
    %v55 = vlaneseq
    %v56 = vshrl.u32 %v55, 7
    %v57 = vsub.s32 0, %v56
    %v58 = vrot.slane %v53, %v57
    %60 = vmatprep.subr.mxu0 0.0
    %61 = vmatpush1.xpose.msra.mxu0 %v48
    %62 = vmatprep.subr.mxu0 0.0
    %63 = vmatpush1.xpose.msra.mxu0 %v49
    %64 = vmatprep.subr.mxu0 0.0
    %65 = vmatpush1.xpose.msra.mxu0 %v50
    %66 = vmatprep.subr.mxu0 0.0
    %67 = vmatpush1.xpose.msra.mxu0 %v51
    %68 = vmatprep.subr.mxu0 0.0
    %69 = vmatpush1.xpose.msra.mxu0 0.0
    %70 = vmatprep.subr.mxu0 0.0
    %71 = vmatpush1.xpose.msra.mxu0 0.0
    %72 = vmatprep.subr.mxu0 0.0
    %73 = vmatpush1.xpose.msra.mxu0 0.0
    %74 = vmatprep.subr.mxu0 0.0
    %75 = vmatpush1.xpose.msra.mxu0 0.0
    %76 = vmatprep.subr.mxu0 0.0
    %77 = vmatpush1.xpose.msra.mxu0 0.0
    %78 = vmatprep.subr.mxu0 0.0
    %79 = vmatpush1.xpose.msra.mxu0 0.0
    %80 = vmatprep.subr.mxu0 0.0
    %81 = vmatpush1.xpose.msra.mxu0 0.0
    %82 = vmatprep.subr.mxu0 0.0
    %83 = vmatpush1.xpose.msra.mxu0 0.0
    %84 = vmatprep.subr.mxu0 0.0
    %85 = vmatpush1.xpose.msra.mxu0 0.0
    %86 = vmatprep.subr.mxu0 0.0
    %87 = vmatpush1.xpose.msra.mxu0 0.0
    %88 = vmatprep.subr.mxu0 0.0
    %89 = vmatpush1.xpose.msra.mxu0 0.0
    %90 = vmatprep.subr.mxu0 0.0
    %91 = vmatpush1.xpose.msra.mxu0 0.0
    %92 = vmatprep.subr.mxu0 0.0
    %93 = vmatpush1.xpose.msra.mxu0 0.0
    %94 = vmatprep.subr.mxu0 0.0
    %95 = vmatpush1.xpose.msra.mxu0 0.0
    %96 = vmatprep.subr.mxu0 0.0
    %97 = vmatpush1.xpose.msra.mxu0 0.0
    %98 = vmatprep.subr.mxu0 0.0
    %99 = vmatpush1.xpose.msra.mxu0 0.0
    %100 = vmatprep.subr.mxu0 0.0
    %101 = vmatpush1.xpose.msra.mxu0 0.0
    %102 = vmatprep.subr.mxu0 0.0
    %103 = vmatpush1.xpose.msra.mxu0 0.0
    %104 = vmatprep.subr.mxu0 0.0
    %105 = vmatpush1.xpose.msra.mxu0 0.0
    %106 = vmatprep.subr.mxu0 0.0
    %107 = vmatpush1.xpose.msra.mxu0 0.0
    %108 = vmatprep.subr.mxu0 0.0
    %109 = vmatpush1.xpose.msra.mxu0 0.0
    %110 = vmatprep.subr.mxu0 0.0
    %111 = vmatpush1.xpose.msra.mxu0 0.0
    %112 = vmatprep.subr.mxu0 0.0
    %113 = vmatpush1.xpose.msra.mxu0 0.0
    %114 = vmatprep.subr.mxu0 0.0
    %115 = vmatpush1.xpose.msra.mxu0 0.0
    %116 = vmatprep.subr.mxu0 0.0
    %117 = vmatpush1.xpose.msra.mxu0 0.0
    %118 = vmatprep.subr.mxu0 0.0
    %119 = vmatpush1.xpose.msra.mxu0 0.0
    %120 = vmatprep.subr.mxu0 0.0
    %121 = vmatpush1.xpose.msra.mxu0 0.0
    %122 = vmatprep.subr.mxu0 0.0
    %123 = vmatpush1.xpose.msra.mxu0 0.0
    %124 = vmatprep.mubr.f32.mxu0 0.0
    %125 = vmatmul.mubr.f32.gmra.mrb[0].mxu0 %v47
    %v126 = vpop.f32.mrb[0].mxu0
    %v127 = vadd.f32 %v58, %v126
    %v128 = vpop.f32.mrb[0].mxu0
    %129 = vdwg.mxu0
    %v130 = vmax.f32 %v127, 0.0
    %v131 = vld [vmem:[%s4] sm:$0x1]
    %v133 = vlaneseq
    %v134 = vshrl.u32 %v133, 7
    %v135 = vsub.s32 0, %v134
    %v136 = vrot.slane %v131, %v135
    %vm138 = vcmask 261120
    %v140 = vsel %vm138, %v130, 0
    %v143 = vsel %vm138, %v52, 0
    %145 = vmatprep.subr.mxu0 0.0
    %146 = vmatpush1.xpose.msra.mxu0 %v143
    %147 = vmatprep.subr.mxu0 0.0
    %148 = vmatpush1.xpose.msra.mxu0 0.0
    %149 = vmatprep.subr.mxu0 0.0
    %150 = vmatpush1.xpose.msra.mxu0 0.0
    %151 = vmatprep.subr.mxu0 0.0
    %152 = vmatpush1.xpose.msra.mxu0 0.0
    %153 = vmatprep.subr.mxu0 0.0
    %154 = vmatpush1.xpose.msra.mxu0 0.0
    %155 = vmatprep.subr.mxu0 0.0
    %156 = vmatpush1.xpose.msra.mxu0 0.0
    %157 = vmatprep.subr.mxu0 0.0
    %158 = vmatpush1.xpose.msra.mxu0 0.0
    %159 = vmatprep.subr.mxu0 0.0
    %160 = vmatpush1.xpose.msra.mxu0 0.0
    %161 = vmatprep.subr.mxu0 0.0
    %162 = vmatpush1.xpose.msra.mxu0 0.0
    %163 = vmatprep.subr.mxu0 0.0
    %164 = vmatpush1.xpose.msra.mxu0 0.0
    %165 = vmatprep.subr.mxu0 0.0
    %166 = vmatpush1.xpose.msra.mxu0 0.0
    %167 = vmatprep.subr.mxu0 0.0
    %168 = vmatpush1.xpose.msra.mxu0 0.0
    %169 = vmatprep.subr.mxu0 0.0
    %170 = vmatpush1.xpose.msra.mxu0 0.0
    %171 = vmatprep.subr.mxu0 0.0
    %172 = vmatpush1.xpose.msra.mxu0 0.0
    %173 = vmatprep.subr.mxu0 0.0
    %174 = vmatpush1.xpose.msra.mxu0 0.0
    %175 = vmatprep.subr.mxu0 0.0
    %176 = vmatpush1.xpose.msra.mxu0 0.0
    %177 = vmatprep.subr.mxu0 0.0
    %178 = vmatpush1.xpose.msra.mxu0 0.0
    %179 = vmatprep.subr.mxu0 0.0
    %180 = vmatpush1.xpose.msra.mxu0 0.0
    %181 = vmatprep.subr.mxu0 0.0
    %182 = vmatpush1.xpose.msra.mxu0 0.0
    %183 = vmatprep.subr.mxu0 0.0
    %184 = vmatpush1.xpose.msra.mxu0 0.0
    %185 = vmatprep.subr.mxu0 0.0
    %186 = vmatpush1.xpose.msra.mxu0 0.0
    %187 = vmatprep.subr.mxu0 0.0
    %188 = vmatpush1.xpose.msra.mxu0 0.0
    %189 = vmatprep.subr.mxu0 0.0
    %190 = vmatpush1.xpose.msra.mxu0 0.0
    %191 = vmatprep.subr.mxu0 0.0
    %192 = vmatpush1.xpose.msra.mxu0 0.0
    %193 = vmatprep.subr.mxu0 0.0
    %194 = vmatpush1.xpose.msra.mxu0 0.0
    %195 = vmatprep.subr.mxu0 0.0
    %196 = vmatpush1.xpose.msra.mxu0 0.0
    %197 = vmatprep.subr.mxu0 0.0
    %198 = vmatpush1.xpose.msra.mxu0 0.0
    %199 = vmatprep.subr.mxu0 0.0
    %200 = vmatpush1.xpose.msra.mxu0 0.0
    %201 = vmatprep.subr.mxu0 0.0
    %202 = vmatpush1.xpose.msra.mxu0 0.0
    %203 = vmatprep.subr.mxu0 0.0
    %204 = vmatpush1.xpose.msra.mxu0 0.0
    %205 = vmatprep.subr.mxu0 0.0
    %206 = vmatpush1.xpose.msra.mxu0 0.0
    %207 = vmatprep.subr.mxu0 0.0
    %208 = vmatpush1.xpose.msra.mxu0 0.0
    %209 = vmatprep.mubr.f32.mxu0 0.0
    %210 = vmatmul.mubr.f32.gmra.mrb[0].mxu0 %v140
    %v211 = vpop.f32.mrb[0].mxu0
    %v212 = vadd.f32 %v136, %v211
    %v213 = vpop.f32.mrb[0].mxu0
    %214 = vdwg.mxu0
    %vm215 = vcmask 39936
    %v216 = vsel %vm215, %v212, -inf
    %217 = vmax.xlane.f32.xlu0 %v216
    %v218 = vpop.xlane.xlu0 %217
    %v219 = vsub.f32 %v212, %v218
    %v220 = vmul.f32 %v219, 1.442695
    %v221 = vpow.pop %v220
    %v222 = vsel %vm215, %v221, 0.0
    %223 = vadd.xlane.f32.xlu0 %v222
    %v224 = vpop.xlane.xlu0 %223
    %v225 = vlog2.pop %v224
    %v226 = vmul.f32 %v225, 0.6931472
    %v227 = vsub.f32 %v219, %v226
    %228 = vst.msk [vmem:[#allocation7] sm:$0xff] %vm215, %v227
    // Predicated region
    $region30: #{tpu_custom_call.1} parent=1 // pred_check
      _
    $region31: #{tpu_custom_call.1} parent=1 // pred_check_branch
      %230 = sbr.rel (0) target = $region33
    $region32: #{tpu_custom_call.1} parent=1 // pred_region
      %s232 = ssub.s32 128, 128
      %233 = vsyncadd [#allocation4], %s232
      %s235 = sshll.u32 [#allocation7], 4
      %s236 = int_to_ptr.vmem [resolvable:$true] %s235
      %238 = dma.vmem_to_hbm [thread:$0]  %s236, 128, %s5, [#allocation4]
    $region33: #{tpu_custom_call.1} parent=1 // pred_fallthru
      _
    // Predicated region
    $region34: #{tpu_custom_call.1} parent=1 // pred_check
      _
    $region35: #{tpu_custom_call.1} parent=1 // pred_check_branch
      %240 = sbr.rel (0) target = $region37
    $region36: #{tpu_custom_call.1} parent=1 // pred_region
      %241 = dma.done [#allocation4], 128
    $region37: #{tpu_custom_call.1} parent=1 // pred_fallthru
      _
    %242 = vsyncpa [#allocation3], 1
    %243 = vsyncpa [#allocation6], 1
    %244 = vsyncpa [#allocation4], 1

</llo_original>
